<compile_context>
chip_gen: v7x
topology: tpu7x:2x2x1
jax: 0.10.0
libtpu: 0.0.40
codegen_flags: <defaults>
</compile_context>

<pallas_src>
import functools

import jax
import jax.numpy as jnp
from jax.experimental import pallas as pl
from jax.experimental.pallas import tpu as pltpu


# --------------------------------------------------------------------------------------
# Kernels
# --------------------------------------------------------------------------------------

def _binarize(m):
    if jnp.issubdtype(m.dtype, jnp.floating):
        return m > 0.5
    return m != 0


def _blend_tiled_kernel(imgs_w_ref, imgs_ref, masks_ref, out_img_ref, out_mask_ref):
    """Grid = (batch_blocks, lane_blocks, C): one (tb, tl) tile of ONE channel per step.

    The mask block index depends only on (b, j), so it stays resident across the
    channel axis; the int mask output is written once (c == 0) per (b, j) block and
    flushed to HBM once when (b, j) changes.
    """
    mb = _binarize(masks_ref[...])
    out_img_ref[...] = jnp.where(mb, imgs_w_ref[...], imgs_ref[...])

    @pl.when(pl.program_id(2) == 0)
    def _():
        out_mask_ref[...] = mb.astype(out_mask_ref.dtype)


def _blend_rows_kernel(imgs_w_ref, imgs_ref, masks_ref, out_img_ref, out_mask_ref,
                       *, C, HW):
    """Fallback for HW % 128 != 0: whole (tb, C*HW) rows per step, per-channel slices."""
    mb = _binarize(masks_ref[...])
    out_mask_ref[...] = mb.astype(out_mask_ref.dtype)
    for c in range(C):                              # static loop, static slices
        sl = slice(c * HW, (c + 1) * HW)
        out_img_ref[:, sl] = jnp.where(mb, imgs_w_ref[:, sl], imgs_ref[:, sl])


# --------------------------------------------------------------------------------------
# Tiling plan helpers (host-side)
# --------------------------------------------------------------------------------------

def _vmem_capacity_bytes():
    try:
        return int(pltpu.get_tpu_info().vmem_capacity_bytes)
    except Exception:
        return 64 << 20                             # conservative (v7x per-TC VMEM)


def _mult8_divisors(n):
    return [d for d in range(8, n + 1, 8) if n % d == 0]


def _lane_tile(HW, max_elems):
    """Largest divisor of HW that is a multiple of 128 and <= max_elems (min 128)."""
    M = HW // 128
    best = 128
    for d in range(1, int(M ** 0.5) + 1):
        if M % d == 0:
            for q in (d, M // d):
                t = q * 128
                if best < t <= max_elems:
                    best = t
    return best


# --------------------------------------------------------------------------------------
# Forward wrapper
# --------------------------------------------------------------------------------------

def augmenter_forward(imgs_w, imgs, masks, *, mask_dtype=jnp.int32, donate_imgs_w=False):
    """imgs_w, imgs: (B, C, H, W); masks: (B, 1, H, W) in any float/int/bool dtype.

    mask_dtype:    dtype of returned mask targets (torch .int() -> int32 default;
                   pass jnp.int8 to cut HBM write traffic if the consumer allows it).
    donate_imgs_w: alias imgs_w -> imgs_aug (saves one BxCxHxW HBM buffer when donated).
    """
    B, C, H, W = imgs_w.shape
    HW, CHW = H * W, C * H * W

    iw = imgs_w.reshape(B, CHW)
    im = imgs.reshape(B, CHW)
    mk = masks.reshape(B, HW)

    img_isz = jnp.dtype(imgs_w.dtype).itemsize
    m_in_isz = jnp.dtype(masks.dtype).itemsize
    m_out_isz = jnp.dtype(mask_dtype).itemsize

    # Generation-aware block budget: one grid step should move several MiB (amortizing
    # ~0.35us/step) while the double-buffered footprint stays within ~75% of VMEM.
    vmem_cap = _vmem_capacity_bytes()
    per_elem = 3 * img_isz + m_in_isz + m_out_isz        # bytes/elem across all buffers
    target_bytes = max(1 << 20, (int(vmem_cap * 0.75) // (2 * per_elem)) * img_isz)

    if HW % 128 == 0:
        # ---------- fast path: 3-D grid (batch block, lane block within HW, channel) ----
        tb = B if (B <= 8 or B % 8 != 0) else 8
        # TODO(synk): for B > 8 with B % 8 != 0 we fall back to full-B blocks (the lane
        #             tile shrinks to compensate); padding B to a multiple of 8 tiles better.
        tl = _lane_tile(HW, max(128, target_bytes // (tb * img_isz)))
        if tl == HW and B % 8 == 0 and B > tb:
            # Whole-channel tiles fit: grow the batch tile toward the byte target but keep
            # >= 2 batch blocks so both v7x TensorCores get work.
            cap_rows = max(8, target_bytes // (HW * img_isz))
            cands = [d for d in _mult8_divisors(B) if d <= cap_rows]
            if cands:
                multi = [d for d in cands if B // d >= 2]
                tb = max(multi) if multi else max(cands)
        nb, nj = B // tb, HW // tl
        if nb == 1 and nj == 1 and HW % 256 == 0:
            tl, nj = HW // 2, 2                          # ensure >=2 parallel blocks (2 TCs)

        grid = (nb, nj, C)
        img_spec = pl.BlockSpec((tb, tl), lambda b, j, c, nj=nj: (b, c * nj + j))
        msk_spec = pl.BlockSpec((tb, tl), lambda b, j, c: (b, j))
        in_specs = [img_spec, img_spec, msk_spec]
        out_specs = [img_spec, msk_spec]
        dims = ("parallel", "parallel", "arbitrary")
        kernel = _blend_tiled_kernel
        vmem_need = 2 * tb * tl * per_elem
    else:
        # ---------- fallback: whole (tb, C*HW) rows; per-channel slices are unaligned ----
        # TODO(synk): pad W so HW % 128 == 0 to recover lane-dense stores on this path.
        cap_rows = max(1, target_bytes // (CHW * img_isz))
        if B <= 8 or B % 8 != 0:
            tb = B
        else:
            cands = [d for d in _mult8_divisors(B) if d <= max(8, cap_rows)] or [8]
            multi = [d for d in cands if B // d >= 2]
            tb = max(multi) if multi else max(cands)
        grid = (B // tb,)
        in_specs = [pl.BlockSpec((tb, CHW), lambda b: (b, 0)),
                    pl.BlockSpec((tb, CHW), lambda b: (b, 0)),
                    pl.BlockSpec((tb, HW), lambda b: (b, 0))]
        out_specs = [pl.BlockSpec((tb, CHW), lambda b: (b, 0)),
                     pl.BlockSpec((tb, HW), lambda b: (b, 0))]
        dims = ("parallel",)
        kernel = functools.partial(_blend_rows_kernel, C=C, HW=HW)
        vmem_need = 2 * tb * (3 * CHW * img_isz + HW * (m_in_isz + m_out_isz))

    vmem_limit = int(min(max(vmem_need + (4 << 20), 32 << 20), int(vmem_cap * 0.85)))

    out_img, out_mask = pl.pallas_call(
        kernel,
        out_shape=(jax.ShapeDtypeStruct((B, CHW), imgs_w.dtype),
                   jax.ShapeDtypeStruct((B, HW), mask_dtype)),
        grid_spec=pltpu.PrefetchScalarGridSpec(
            num_scalar_prefetch=0, grid=grid,
            in_specs=in_specs, out_specs=out_specs),
        compiler_params=pltpu.CompilerParams(
            dimension_semantics=dims, vmem_limit_bytes=vmem_limit),
        input_output_aliases=({0: 0} if donate_imgs_w else {}),
    )(iw, im, mk)

    return out_img.reshape(B, C, H, W), out_mask.reshape(B, 1, H, W)


# --------------------------------------------------------------------------------------
# Post-augmentation (identity-only branches) and augmentation parsing
# --------------------------------------------------------------------------------------

def parse_augmentations(augs, augs_params):
    """Mirror of Augmenter.parse_augmentations (names + normalized probs)."""
    names, probs = [], []
    for name, p in augs.items():
        names.append(name)
        probs.append(float(p))
    probs = jnp.asarray(probs, dtype=jnp.float32)
    probs = probs / probs.sum()
    return names, probs


def post_augment(key, image, mask, aug_probs):
    """Sample an augmentation index on-device and apply it (no host sync)."""
    idx = jax.random.categorical(key, jnp.log(aug_probs))
    # TODO(synk): rotate/resize/crop/perspective/jpeg/blur/color augmentations are
    #             stochastic image-space ops with no clean Pallas path; every branch
    #             currently applies identity semantics.
    branches = [lambda im, mk: (im, mk) for _ in range(aug_probs.shape[0])]
    image, mask = jax.lax.switch(idx, branches, image, mask)
    return image, mask.astype(jnp.int32), idx


if __name__ == "__main__":
    key = jax.random.PRNGKey(0)
    k_w, k_i, k_m, k_aug = jax.random.split(key, 4)

    B, C, H, W = 2, 4, 16, 16
    imgs_w = jax.random.uniform(k_w, (B, C, H, W), dtype=jnp.float32)
    imgs = jax.random.uniform(k_i, (B, C, H, W), dtype=jnp.float32)
    masks = (jax.random.uniform(k_m, (B, 1, H, W)) > 0.5).astype(jnp.float32)

    # Augmenter.forward (training): embed mask, blend, post-augment.
    imgs_aug, mask_targets = augmenter_forward(imgs_w, imgs, masks)

    aug_names, aug_probs = parse_augmentations(
        augs={"identity": 4, "resize": 1, "crop": 1},
        augs_params={"resize": {"min_size": 0.7, "max_size": 1.5},
                     "crop": {"min_size": 0.7, "max_size": 1.0}},
    )
    imgs_aug, mask_targets, aug_idx = post_augment(
        k_aug, imgs_aug, mask_targets, aug_probs
    )

    imgs_aug = jax.block_until_ready(imgs_aug)
    mask_targets = jax.block_until_ready(mask_targets)
    selected_aug = aug_names[int(aug_idx)]  # host lookup only after results are ready

    # Reference check of the Pallas hot path (blend + int mask).
    m_ref = (masks > 0.5).astype(jnp.float32)
    ref_img = imgs_w * m_ref + imgs * (1.0 - m_ref)
    assert jnp.allclose(imgs_aug, ref_img, atol=1e-6)
    assert jnp.array_equal(mask_targets, m_ref.astype(jnp.int32))
    assert imgs_aug.shape == (B, C, H, W)
    assert mask_targets.shape == (B, 1, H, W)
    assert mask_targets.dtype == jnp.int32
    assert selected_aug in aug_names

    print("KERNEL_OK")
</pallas_src>

<mosaic_0001>
module attributes {stable_mosaic.version = 11 : i64} {
  func.func @_blend_tiled_kernel(%arg0: i32, %arg1: i32, %arg2: i32, %arg3: memref<2x128xf32, #tpu.memory_space<vmem>>, %arg4: memref<2x128xf32, #tpu.memory_space<vmem>>, %arg5: memref<2x128xf32, #tpu.memory_space<vmem>>, %arg6: memref<2x128xf32, #tpu.memory_space<vmem>>, %arg7: memref<2x128xi32, #tpu.memory_space<vmem>>) attributes {dimension_semantics = [#tpu.dimension_semantics<parallel>, #tpu.dimension_semantics<parallel>, #tpu.dimension_semantics<arbitrary>], iteration_bounds = array<i64: 1, 2, 4>, scalar_prefetch = 0 : i64, scratch_operands = 0 : i64, tpu.core_type = #tpu.core_type<tc>, window_params = [{transform_indices = @transform_0, window_bounds = array<i64: 2, 128>}, {transform_indices = @transform_1, window_bounds = array<i64: 2, 128>}, {transform_indices = @transform_2, window_bounds = array<i64: 2, 128>}, {transform_indices = @transform_3, window_bounds = array<i64: 2, 128>}, {transform_indices = @transform_4, window_bounds = array<i64: 2, 128>}]} {
    %c0 = arith.constant 0 : index
    %c0_0 = arith.constant 0 : index
    %0 = vector.load %arg5[%c0, %c0_0] : memref<2x128xf32, #tpu.memory_space<vmem>>, vector<2x128xf32>
    %cst = arith.constant 5.000000e-01 : f32
    %1 = vector.broadcast %cst : f32 to vector<2x128xf32>
    %2 = arith.cmpf ogt, %0, %1 : vector<2x128xf32>
    %c0_1 = arith.constant 0 : index
    %c0_2 = arith.constant 0 : index
    %3 = vector.load %arg3[%c0_1, %c0_2] : memref<2x128xf32, #tpu.memory_space<vmem>>, vector<2x128xf32>
    %c0_3 = arith.constant 0 : index
    %c0_4 = arith.constant 0 : index
    %4 = vector.load %arg4[%c0_3, %c0_4] : memref<2x128xf32, #tpu.memory_space<vmem>>, vector<2x128xf32>
    %5 = arith.select %2, %3, %4 : vector<2x128xi1>, vector<2x128xf32>
    %c0_5 = arith.constant 0 : index
    %c0_6 = arith.constant 0 : index
    %6 = vector.load %arg6[%c0_5, %c0_6] : memref<2x128xf32, #tpu.memory_space<vmem>>, vector<2x128xf32>
    tpu.vector_store %arg6[%c0_5, %c0_6], %5 {strides = array<i32>} : memref<2x128xf32, #tpu.memory_space<vmem>>, vector<2x128xf32>,
    %c0_i32 = arith.constant 0 : i32
    %7 = arith.cmpi eq, %arg2, %c0_i32 : i32
    %8 = arith.extui %7 : i1 to i32
    %c0_i32_7 = arith.constant 0 : i32
    %9 = arith.cmpi ne, %8, %c0_i32_7 : i32
    scf.if %9 {
      %10 = arith.extui %2 : vector<2x128xi1> to vector<2x128xi32>
      %c0_8 = arith.constant 0 : index
      %c0_9 = arith.constant 0 : index
      %11 = vector.load %arg7[%c0_8, %c0_9] : memref<2x128xi32, #tpu.memory_space<vmem>>, vector<2x128xi32>
      tpu.vector_store %arg7[%c0_8, %c0_9], %10 {strides = array<i32>} : memref<2x128xi32, #tpu.memory_space<vmem>>, vector<2x128xi32>,
    } else {
    }
    return
  }
  func.func @transform_0(%arg0: i32, %arg1: i32, %arg2: i32) -> (i32, i32) {
    %c2_i32 = arith.constant 2 : i32
    %0 = arith.muli %arg2, %c2_i32 : i32
    %1 = arith.addi %0, %arg1 : i32
    %c0_i32 = arith.constant 0 : i32
    return %arg0, %1 : i32, i32
  }
  func.func @transform_1(%arg0: i32, %arg1: i32, %arg2: i32) -> (i32, i32) {
    %c2_i32 = arith.constant 2 : i32
    %0 = arith.muli %arg2, %c2_i32 : i32
    %1 = arith.addi %0, %arg1 : i32
    %c0_i32 = arith.constant 0 : i32
    return %arg0, %1 : i32, i32
  }
  func.func @transform_2(%arg0: i32, %arg1: i32, %arg2: i32) -> (i32, i32) {
    %c0_i32 = arith.constant 0 : i32
    return %arg0, %arg1 : i32, i32
  }
  func.func @transform_3(%arg0: i32, %arg1: i32, %arg2: i32) -> (i32, i32) {
    %c2_i32 = arith.constant 2 : i32
    %0 = arith.muli %arg2, %c2_i32 : i32
    %1 = arith.addi %0, %arg1 : i32
    %c0_i32 = arith.constant 0 : i32
    return %arg0, %1 : i32, i32
  }
  func.func @transform_4(%arg0: i32, %arg1: i32, %arg2: i32) -> (i32, i32) {
    %c0_i32 = arith.constant 0 : i32
    return %arg0, %arg1 : i32, i32
  }
}

</mosaic_0001>

<llo_original>
// kernel: tpu_custom_call.1
$region0: #{tpu_custom_call.1}
  #allocation0 [shape = 'u32[]', space=smem, size = 0x4, offset = 0x4, fixed_abs, tag = 'smem constant byte address 0x4 - core index']
  #allocation1 [shape = 'u32[144,128]{1,0:T(1,128)}', space=vmem, size = 0x12000, scoped, tag = 'internal scratch']
  %s0 = inlined_call_operand.hbm [shape: f32[2,1024], index: 0, kind: input, shape index: {}]
  %s1 = inlined_call_operand.hbm [shape: f32[2,1024], index: 1, kind: input, shape index: {}]
  %s2 = inlined_call_operand.vmem [shape: f32[2,256], index: 2, kind: input, shape index: {}]
  %s3 = inlined_call_operand.hbm [shape: f32[2,1024], index: 3, kind: output, shape index: {0}]
  %s4 = inlined_call_operand.hbm [shape: s32[2,256], index: 4, kind: output, shape index: {1}]
  %5 = xla_tuple %s3, %s4
  %s6 = sld [smem:[#allocation0]]
  $region65: #{tpu_custom_call.1} parent=0
    _
  %s8 = ssub.s32 1, %s6
  %s9 = scalar_select 0, %s8, %s6
  $region1: #{tpu_custom_call.1} parent=0
    #allocation2 [shape = 'u8[2048]{0}', space=vmem, size = 0x800, scoped, tag = 'input window, operand 0']
    #allocation3 [shape = 's32[2]{0}', space=sflag, size = 0x8, scoped, tag = 'scoped memory for tpu_custom_call.1']
    #allocation4 [shape = 's32[2]{0}', space=sflag, size = 0x8, scoped, tag = 'scoped memory for tpu_custom_call.1']
    #allocation5 [shape = 'u8[2048]{0}', space=vmem, size = 0x800, scoped, tag = 'input window, operand 1']
    #allocation6 [shape = 's32[2]{0}', space=sflag, size = 0x8, scoped, tag = 'scoped memory for tpu_custom_call.1']
    #allocation7 [shape = 'u8[2048]{0}', space=vmem, size = 0x800, scoped, tag = 'output window, operand 0']
    #allocation8 [shape = 'u8[2048]{0}', space=vmem, size = 0x800, scoped, tag = 'output window, operand 1']
    #allocation9 [shape = 's32[2]{0}', space=sflag, size = 0x8, scoped, tag = 'scoped memory for tpu_custom_call.1']
    %10 = vsyncpa [#allocation3], 0
    %s11 = scalar_lea.sflag [#allocation3], 1
    %12 = vsyncpa %s11, 0
    %13 = vsyncpa [#allocation6], 0
    %s14 = scalar_lea.sflag [#allocation6], 1
    %15 = vsyncpa %s14, 0
    %16 = vsyncpa [#allocation4], 0
    %s17 = scalar_lea.sflag [#allocation4], 1
    %18 = vsyncpa %s17, 0
    %19 = vsyncpa [#allocation9], 0
    %s20 = scalar_lea.sflag [#allocation9], 1
    %21 = vsyncpa %s20, 0
    loop: start=0, step=1, limit=10
    $region2: #{tpu_custom_call.1} parent=1 // loop_pre_header
      _
    $region3: #{tpu_custom_call.1} parent=1 // loop_header
      %s23 = sphi 0, %s27
      %p24 = scmp.ge.s32.totalorder %s23, 10
      %s30 = sphi 0, %s49
      %s31 = sphi 0, %s45
      %s32 = sphi 0, %s41
      %s33 = sphi 0, %s30
      %s34 = sphi 0, %s31
      %s35 = sphi 0, %s32
      %s36 = sphi 0, %s33
      %s37 = sphi 0, %s34
      %s38 = sphi 0, %s35
      %s58 = sphi 0, %s60
      %s61 = sphi 0, %s58
      %s62 = sphi 0, %s61
      %s78 = sphi 0, %s62
      %s90 = sphi 0, %s92
      %s93 = sphi 0, %s90
      %s94 = sphi 0, %s93
      %s110 = sphi 0, %s94
      %s118 = sphi 0, %s120
      %s121 = sphi 0, %s118
      %s122 = sphi 0, %s121
      %s138 = sphi 0, %s122
      %s150 = sphi 0, %s152
      %s153 = sphi 0, %s150
      %s154 = sphi 0, %s153
      %s170 = sphi 0, %s154
      %s178 = sphi 0, %s180
      %s181 = sphi 0, %s178
      %s182 = sphi 0, %s181
      %s198 = sphi 0, %s182
    $region4: #{tpu_custom_call.1} parent=1 // loop_header_branch
      %26 = sbr.rel (%p24) target = $region8
    $region5: #{tpu_custom_call.1} parent=1 // loop_body
      %s28 = ssub.s32 %s23, 1
      %s29 = ssub.s32 %s23, 2
      %s39 = sadd.s32 1, %s32
      %p40 = scmp.ge.s32.totalorder %s39, 4
      %s41 = scalar_select %p40, 0, %s39
      %s42 = sadd.s32 1, %s31
      %s43 = scalar_select %p40, %s42, %s31
      %p44 = scmp.ge.s32.totalorder %s43, 2
      %s45 = scalar_select %p44, 0, %s43
      %s46 = sadd.s32 1, %s30
      %s47 = scalar_select %p44, %s46, %s30
      %p48 = scmp.ge.s32.totalorder %s47, 1
      %s49 = scalar_select %p48, 0, %s47
      %s50 = smul.u32 %s32, 2
      %s51 = sadd.s32 %s50, %s31
      %s52 = smul.u32 %s41, 2
      %s53 = sadd.s32 %s52, %s45
      %s54 = ssub.s32 %s30, %s49
      %s55 = ssub.s32 %s51, %s53
      %s56 = sor.u32 %s54, %s55
      %p57 = scmp.eq.s32.totalorder %s56, 0
      %s59 = sadd.s32 %s58, 1
      %s60 = scalar_select %p57, %s58, %s59
      %p63 = pneg %p57
      %p64 = scmp.eq.s32.totalorder %s23, 7
      %p65 = por %p63, %p64
      %p66 = scmp.ne.s32.totalorder %s58, %s61
      %p67 = scmp.eq.s32.totalorder %s23, 0
      %p68 = por %p66, %p67
      %p69 = scmp.ne.s32.totalorder %s58, %s61
      %p70 = scmp.eq.s32.totalorder %s28, 7
      %p71 = por %p69, %p70
      %p72 = scmp.ne.s32.totalorder %s61, %s62
      %p73 = scmp.eq.s32.totalorder %s28, 0
      %p74 = por %p72, %p73
      %p75 = scmp.ne.s32.totalorder %s61, %s62
      %p76 = scmp.eq.s32.totalorder %s29, 7
      %p77 = por %p75, %p76
      %p79 = scmp.ne.s32.totalorder %s62, %s78
      %p80 = scmp.eq.s32.totalorder %s29, 0
      %p81 = por %p79, %p80
      %s82 = smul.u32 %s32, 2
      %s83 = sadd.s32 %s82, %s31
      %s84 = smul.u32 %s41, 2
      %s85 = sadd.s32 %s84, %s45
      %s86 = ssub.s32 %s30, %s49
      %s87 = ssub.s32 %s83, %s85
      %s88 = sor.u32 %s86, %s87
      %p89 = scmp.eq.s32.totalorder %s88, 0
      %s91 = sadd.s32 %s90, 1
      %s92 = scalar_select %p89, %s90, %s91
      %p95 = pneg %p89
      %p96 = scmp.eq.s32.totalorder %s23, 7
      %p97 = por %p95, %p96
      %p98 = scmp.ne.s32.totalorder %s90, %s93
      %p99 = scmp.eq.s32.totalorder %s23, 0
      %p100 = por %p98, %p99
      %p101 = scmp.ne.s32.totalorder %s90, %s93
      %p102 = scmp.eq.s32.totalorder %s28, 7
      %p103 = por %p101, %p102
      %p104 = scmp.ne.s32.totalorder %s93, %s94
      %p105 = scmp.eq.s32.totalorder %s28, 0
      %p106 = por %p104, %p105
      %p107 = scmp.ne.s32.totalorder %s93, %s94
      %p108 = scmp.eq.s32.totalorder %s29, 7
      %p109 = por %p107, %p108
      %p111 = scmp.ne.s32.totalorder %s94, %s110
      %p112 = scmp.eq.s32.totalorder %s29, 0
      %p113 = por %p111, %p112
      %s114 = ssub.s32 %s30, %s49
      %s115 = ssub.s32 %s31, %s45
      %s116 = sor.u32 %s114, %s115
      %p117 = scmp.eq.s32.totalorder %s116, 0
      %s119 = sadd.s32 %s118, 1
      %s120 = scalar_select %p117, %s118, %s119
      %p123 = pneg %p117
      %p124 = scmp.eq.s32.totalorder %s23, 7
      %p125 = por %p123, %p124
      %p126 = scmp.ne.s32.totalorder %s118, %s121
      %p127 = scmp.eq.s32.totalorder %s23, 0
      %p128 = por %p126, %p127
      %p129 = scmp.ne.s32.totalorder %s118, %s121
      %p130 = scmp.eq.s32.totalorder %s28, 7
      %p131 = por %p129, %p130
      %p132 = scmp.ne.s32.totalorder %s121, %s122
      %p133 = scmp.eq.s32.totalorder %s28, 0
      %p134 = por %p132, %p133
      %p135 = scmp.ne.s32.totalorder %s121, %s122
      %p136 = scmp.eq.s32.totalorder %s29, 7
      %p137 = por %p135, %p136
      %p139 = scmp.ne.s32.totalorder %s122, %s138
      %p140 = scmp.eq.s32.totalorder %s29, 0
      %p141 = por %p139, %p140
      %s142 = smul.u32 %s32, 2
      %s143 = sadd.s32 %s142, %s31
      %s144 = smul.u32 %s41, 2
      %s145 = sadd.s32 %s144, %s45
      %s146 = ssub.s32 %s30, %s49
      %s147 = ssub.s32 %s143, %s145
      %s148 = sor.u32 %s146, %s147
      %p149 = scmp.eq.s32.totalorder %s148, 0
      %s151 = sadd.s32 %s150, 1
      %s152 = scalar_select %p149, %s150, %s151
      %p155 = pneg %p149
      %p156 = scmp.eq.s32.totalorder %s23, 7
      %p157 = por %p155, %p156
      %p158 = scmp.ne.s32.totalorder %s150, %s153
      %p159 = scmp.eq.s32.totalorder %s23, 0
      %p160 = por %p158, %p159
      %p161 = scmp.ne.s32.totalorder %s150, %s153
      %p162 = scmp.eq.s32.totalorder %s28, 7
      %p163 = por %p161, %p162
      %p164 = scmp.ne.s32.totalorder %s153, %s154
      %p165 = scmp.eq.s32.totalorder %s28, 0
      %p166 = por %p164, %p165
      %p167 = scmp.ne.s32.totalorder %s153, %s154
      %p168 = scmp.eq.s32.totalorder %s29, 7
      %p169 = por %p167, %p168
      %p171 = scmp.ne.s32.totalorder %s154, %s170
      %p172 = scmp.eq.s32.totalorder %s29, 0
      %p173 = por %p171, %p172
      %s174 = ssub.s32 %s30, %s49
      %s175 = ssub.s32 %s31, %s45
      %s176 = sor.u32 %s174, %s175
      %p177 = scmp.eq.s32.totalorder %s176, 0
      %s179 = sadd.s32 %s178, 1
      %s180 = scalar_select %p177, %s178, %s179
      %p183 = pneg %p177
      %p184 = scmp.eq.s32.totalorder %s23, 7
      %p185 = por %p183, %p184
      %p186 = scmp.ne.s32.totalorder %s178, %s181
      %p187 = scmp.eq.s32.totalorder %s23, 0
      %p188 = por %p186, %p187
      %p189 = scmp.ne.s32.totalorder %s178, %s181
      %p190 = scmp.eq.s32.totalorder %s28, 7
      %p191 = por %p189, %p190
      %p192 = scmp.ne.s32.totalorder %s181, %s182
      %p193 = scmp.eq.s32.totalorder %s28, 0
      %p194 = por %p192, %p193
      %p195 = scmp.ne.s32.totalorder %s181, %s182
      %p196 = scmp.eq.s32.totalorder %s29, 7
      %p197 = por %p195, %p196
      %p199 = scmp.ne.s32.totalorder %s182, %s198
      %p200 = scmp.eq.s32.totalorder %s29, 0
      %p201 = por %p199, %p200
      %p202 = scmp.le.s32.totalorder 1, %s23
      %p203 = scmp.lt.s32.totalorder %s23, 9
      %p204 = pnand %p202, %p203
      %p205 = pneg %p204
      // Predicated region
      $region9: #{tpu_custom_call.1} parent=5 // pred_check
        _
      $region10: #{tpu_custom_call.1} parent=5 // pred_check_branch
        %207 = sbr.rel (%p204) target = $region12
      $region11: #{tpu_custom_call.1} parent=5 // pred_region
        %s208 = ssub.s32 %s23, 1
      $region12: #{tpu_custom_call.1} parent=5 // pred_fallthru
        _
      %p209 = scmp.lt.s32.totalorder %s23, 8
      // Predicated region
      $region13: #{tpu_custom_call.1} parent=5 // pred_check
        %p210 = pneg %p209
      $region14: #{tpu_custom_call.1} parent=5 // pred_check_branch
        %212 = sbr.rel (%p210) target = $region16
      $region15: #{tpu_custom_call.1} parent=5 // pred_region
        // Predicated region
        $region17: #{tpu_custom_call.1} parent=15 // pred_check
          %p213 = pneg %p68
        $region18: #{tpu_custom_call.1} parent=15 // pred_check_branch
          %215 = sbr.rel (%p213) target = $region20
        $region19: #{tpu_custom_call.1} parent=15 // pred_region
          %s216 = sand.u32 %s58, 1
          %s217 = scalar_lea.sflag [#allocation3], %s216
          %s218 = sand.u32 %s58, 1
          %s219 = smul.addr %s218, 2
          %s220 = scalar_lea.vmem [#allocation2], %s219
          %s221 = smul.u32 %s32, 2
          %s222 = sadd.s32 %s221, %s31
          %s224 = ssub.s32 32, 32
          %225 = vsyncadd %s217, %s224
          %s226 = smul.addr %s30, 8
          %s227 = sadd.s32 %s222, %s226
          %s228 = smul.addr %s227, 32
          %s229 = scalar_lea.hbm %s0, %s228
          %s231 = sshll.u32 %s220, 4
          %s232 = int_to_ptr.vmem [resolvable:$true] %s231
          %234 = dma.hbm_to_vmem [thread:$0]  %s229, 32, %s232, %s217
        $region20: #{tpu_custom_call.1} parent=15 // pred_fallthru
          _
        // Predicated region
        $region21: #{tpu_custom_call.1} parent=15 // pred_check
          %p235 = pneg %p100
        $region22: #{tpu_custom_call.1} parent=15 // pred_check_branch
          %237 = sbr.rel (%p235) target = $region24
        $region23: #{tpu_custom_call.1} parent=15 // pred_region
          %s238 = sand.u32 %s90, 1
          %s239 = scalar_lea.sflag [#allocation6], %s238
          %s240 = sand.u32 %s90, 1
          %s241 = smul.addr %s240, 2
          %s242 = scalar_lea.vmem [#allocation5], %s241
          %s243 = smul.u32 %s32, 2
          %s244 = sadd.s32 %s243, %s31
          %s246 = ssub.s32 32, 32
          %247 = vsyncadd %s239, %s246
          %s248 = smul.addr %s30, 8
          %s249 = sadd.s32 %s244, %s248
          %s250 = smul.addr %s249, 32
          %s251 = scalar_lea.hbm %s1, %s250
          %s253 = sshll.u32 %s242, 4
          %s254 = int_to_ptr.vmem [resolvable:$true] %s253
          %256 = dma.hbm_to_vmem [thread:$0]  %s251, 32, %s254, %s239
        $region24: #{tpu_custom_call.1} parent=15 // pred_fallthru
          _
        // Predicated region
        $region25: #{tpu_custom_call.1} parent=15 // pred_check
          %p257 = pneg %p128
        $region26: #{tpu_custom_call.1} parent=15 // pred_check_branch
          %259 = sbr.rel (%p257) target = $region28
        $region27: #{tpu_custom_call.1} parent=15 // pred_region
          %p260 = scmp.lt.s32.totalorder %s30, 0
          %s261 = scalar_select %p260, %s30, 0
          %p262 = scmp.lt.s32.totalorder %s31, 1
          %s263 = scalar_select %p262, %s31, 1
          %s264 = smul.addr %s261, 2
          %s265 = sadd.s32 %s263, %s264
          %s266 = smul.addr %s265, 2
          %s267 = scalar_lea.vmem %s2, %s266
        $region28: #{tpu_custom_call.1} parent=15 // pred_fallthru
          _
      $region16: #{tpu_custom_call.1} parent=5 // pred_fallthru
        _
      %p268 = scmp.le.s32.totalorder 1, %s23
      %p269 = scmp.lt.s32.totalorder %s23, 9
      %p270 = pnand %p268, %p269
      %p271 = pneg %p270
      // Predicated region
      $region29: #{tpu_custom_call.1} parent=5 // pred_check
        _
      $region30: #{tpu_custom_call.1} parent=5 // pred_check_branch
        %273 = sbr.rel (%p270) target = $region32
      $region31: #{tpu_custom_call.1} parent=5 // pred_region
        %s274 = ssub.s32 %s23, 1
        %s275 = sand.u32 %s61, 1
        %s276 = scalar_lea.sflag [#allocation3], %s275
        %s277 = sand.u32 %s61, 1
        %s278 = smul.addr %s277, 2
        %s279 = scalar_lea.vmem [#allocation2], %s278
        // Predicated region
        $region33: #{tpu_custom_call.1} parent=31 // pred_check
          %p280 = pneg %p74
        $region34: #{tpu_custom_call.1} parent=31 // pred_check_branch
          %282 = sbr.rel (%p280) target = $region36
        $region35: #{tpu_custom_call.1} parent=31 // pred_region
          %283 = dma.done %s276, 32
        $region36: #{tpu_custom_call.1} parent=31 // pred_fallthru
          _
        %s284 = sand.u32 %s93, 1
        %s285 = scalar_lea.sflag [#allocation6], %s284
        %s286 = sand.u32 %s93, 1
        %s287 = smul.addr %s286, 2
        %s288 = scalar_lea.vmem [#allocation5], %s287
        // Predicated region
        $region37: #{tpu_custom_call.1} parent=31 // pred_check
          %p289 = pneg %p106
        $region38: #{tpu_custom_call.1} parent=31 // pred_check_branch
          %291 = sbr.rel (%p289) target = $region40
        $region39: #{tpu_custom_call.1} parent=31 // pred_region
          %292 = dma.done %s285, 32
        $region40: #{tpu_custom_call.1} parent=31 // pred_fallthru
          _
        %s293 = sand.u32 %s61, 1
        %s294 = scalar_lea.sflag [#allocation3], %s293
        %s295 = sand.u32 %s61, 1
        %s296 = smul.addr %s295, 2
        %s297 = scalar_lea.vmem [#allocation2], %s296
        %p298 = pneg %p74
        %p299 = pneg %p71
        %s300 = sand.u32 %s93, 1
        %s301 = scalar_lea.sflag [#allocation6], %s300
        %s302 = sand.u32 %s93, 1
        %s303 = smul.addr %s302, 2
        %s304 = scalar_lea.vmem [#allocation5], %s303
        %p305 = pneg %p106
        %p306 = pneg %p103
        %p307 = scmp.lt.s32.totalorder %s33, 0
        %s308 = scalar_select %p307, %s33, 0
        %p309 = scmp.lt.s32.totalorder %s34, 1
        %s310 = scalar_select %p309, %s34, 1
        %s311 = smul.addr %s308, 2
        %s312 = sadd.s32 %s310, %s311
        %s313 = smul.addr %s312, 2
        %s314 = scalar_lea.vmem %s2, %s313
        %p315 = pneg %p134
        %p316 = pneg %p131
        %p317 = pneg %p166
        %p318 = pneg %p163
        %s319 = sand.u32 %s153, 1
        %s320 = scalar_lea.sflag [#allocation4], %s319
        %s321 = sand.u32 %s153, 1
        %s322 = smul.addr %s321, 2
        %s323 = scalar_lea.vmem [#allocation7], %s322
        %p324 = pneg %p194
        %p325 = pneg %p191
        %s326 = sand.u32 %s181, 1
        %s327 = scalar_lea.sflag [#allocation9], %s326
        %s328 = sand.u32 %s181, 1
        %s329 = smul.addr %s328, 2
        %s330 = scalar_lea.vmem [#allocation8], %s329
        %s331 = smul.u32 %s35, 2
        %s332 = sadd.s32 %s331, %s34
        %s333 = smul.u32 %s35, 2
        %s334 = sadd.s32 %s333, %s34
        %p335 = scmp.lt.s32.totalorder %s33, 0
        %s336 = scalar_select %p335, %s33, 0
        %p337 = scmp.lt.s32.totalorder %s34, 1
        %s338 = scalar_select %p337, %s34, 1
        %s339 = smul.addr %s336, 2
        %s340 = sadd.s32 %s338, %s339
        %s341 = smul.addr %s340, 2
        %s342 = scalar_lea.vmem %s2, %s341
        %s343 = smul.u32 %s35, 2
        %s344 = sadd.s32 %s343, %s34
        %v345 = vld [vmem:[%s342] sm:$0x3]
        %vm346 = vcmp.gt.f32.partialorder %v345, 0.5
        %v347 = vld [vmem:[%s279] sm:$0x3]
        %v348 = vld [vmem:[%s288] sm:$0x3]
        %v349 = vsel %vm346, %v347, %v348
        %350 = vst [vmem:[%s323] sm:$0x3] %v349
        %p351 = scmp.eq.s32.totalorder %s35, 0
        // Predicated region
        $region41: #{tpu_custom_call.1} parent=31 // pred_check
          %p352 = pneg %p351
        $region42: #{tpu_custom_call.1} parent=31 // pred_check_branch
          %354 = sbr.rel (%p352) target = $region44
        $region43: #{tpu_custom_call.1} parent=31 // pred_region
          %v355 = vsel %vm346, 1, 0
          %356 = vst [vmem:[%s330] sm:$0x3] %v355
        $region44: #{tpu_custom_call.1} parent=31 // pred_fallthru
          _
        %s357 = sand.u32 %s153, 1
        %s358 = scalar_lea.sflag [#allocation4], %s357
        %s359 = sand.u32 %s153, 1
        %s360 = smul.addr %s359, 2
        %s361 = scalar_lea.vmem [#allocation7], %s360
        %s362 = sand.u32 %s181, 1
        %s363 = scalar_lea.sflag [#allocation9], %s362
        %s364 = sand.u32 %s181, 1
        %s365 = smul.addr %s364, 2
        %s366 = scalar_lea.vmem [#allocation8], %s365
        // Predicated region
        $region45: #{tpu_custom_call.1} parent=31 // pred_check
          %p367 = pneg %p163
        $region46: #{tpu_custom_call.1} parent=31 // pred_check_branch
          %369 = sbr.rel (%p367) target = $region48
        $region47: #{tpu_custom_call.1} parent=31 // pred_region
          %s370 = smul.u32 %s35, 2
          %s371 = sadd.s32 %s370, %s34
          %s373 = ssub.s32 32, 32
          %374 = vsyncadd %s358, %s373
          %s375 = smul.addr %s33, 8
          %s376 = sadd.s32 %s371, %s375
          %s377 = smul.addr %s376, 32
          %s378 = scalar_lea.hbm %s3, %s377
          %s380 = sshll.u32 %s361, 4
          %s381 = int_to_ptr.vmem [resolvable:$true] %s380
          %383 = dma.vmem_to_hbm [thread:$0]  %s381, 32, %s378, %s358
        $region48: #{tpu_custom_call.1} parent=31 // pred_fallthru
          _
        // Predicated region
        $region49: #{tpu_custom_call.1} parent=31 // pred_check
          %p384 = pneg %p191
        $region50: #{tpu_custom_call.1} parent=31 // pred_check_branch
          %386 = sbr.rel (%p384) target = $region52
        $region51: #{tpu_custom_call.1} parent=31 // pred_region
          %s388 = ssub.s32 32, 32
          %389 = vsyncadd %s363, %s388
          %s390 = smul.addr %s33, 2
          %s391 = sadd.s32 %s34, %s390
          %s392 = smul.addr %s391, 32
          %s393 = scalar_lea.hbm %s4, %s392
          %s395 = sshll.u32 %s366, 4
          %s396 = int_to_ptr.vmem [resolvable:$true] %s395
          %398 = dma.vmem_to_hbm [thread:$0]  %s396, 32, %s393, %s363
        $region52: #{tpu_custom_call.1} parent=31 // pred_fallthru
          _
      $region32: #{tpu_custom_call.1} parent=5 // pred_fallthru
        _
      %p399 = scmp.le.s32.totalorder 2, %s23
      // Predicated region
      $region53: #{tpu_custom_call.1} parent=5 // pred_check
        %p400 = pneg %p399
      $region54: #{tpu_custom_call.1} parent=5 // pred_check_branch
        %402 = sbr.rel (%p400) target = $region56
      $region55: #{tpu_custom_call.1} parent=5 // pred_region
        %s403 = ssub.s32 %s23, 2
        // Predicated region
        $region57: #{tpu_custom_call.1} parent=55 // pred_check
          %p404 = pneg %p169
        $region58: #{tpu_custom_call.1} parent=55 // pred_check_branch
          %406 = sbr.rel (%p404) target = $region60
        $region59: #{tpu_custom_call.1} parent=55 // pred_region
          %s407 = sand.u32 %s154, 1
          %s408 = scalar_lea.sflag [#allocation4], %s407
          %s409 = sand.u32 %s154, 1
          %s410 = smul.addr %s409, 2
          %s411 = scalar_lea.vmem [#allocation7], %s410
          %412 = dma.done %s408, 32
        $region60: #{tpu_custom_call.1} parent=55 // pred_fallthru
          _
        // Predicated region
        $region61: #{tpu_custom_call.1} parent=55 // pred_check
          %p413 = pneg %p197
        $region62: #{tpu_custom_call.1} parent=55 // pred_check_branch
          %415 = sbr.rel (%p413) target = $region64
        $region63: #{tpu_custom_call.1} parent=55 // pred_region
          %s416 = sand.u32 %s182, 1
          %s417 = scalar_lea.sflag [#allocation9], %s416
          %s418 = sand.u32 %s182, 1
          %s419 = smul.addr %s418, 2
          %s420 = scalar_lea.vmem [#allocation8], %s419
          %421 = dma.done %s417, 32
        $region64: #{tpu_custom_call.1} parent=55 // pred_fallthru
          _
      $region56: #{tpu_custom_call.1} parent=5 // pred_fallthru
        _
    $region6: #{tpu_custom_call.1} parent=1 // loop_footer
      %s27 = sadd.s32 1, %s23
    $region7: #{tpu_custom_call.1} parent=1 // loop_footer_branch
      %22 = sbr.rel target = $region3
    $region8: #{tpu_custom_call.1} parent=1 // loop_exit
      _
    %422 = vsyncpa [#allocation3], 1
    %s423 = scalar_lea.sflag [#allocation3], 1
    %424 = vsyncpa %s423, 1
    %425 = vsyncpa [#allocation6], 1
    %s426 = scalar_lea.sflag [#allocation6], 1
    %427 = vsyncpa %s426, 1
    %428 = vsyncpa [#allocation4], 1
    %s429 = scalar_lea.sflag [#allocation4], 1
    %430 = vsyncpa %s429, 1
    %431 = vsyncpa [#allocation9], 1
    %s432 = scalar_lea.sflag [#allocation9], 1
    %433 = vsyncpa %s432, 1

</llo_original>
